<compile_context>
chip_gen: v6e
topology: v6e:2x2x1
jax: 0.10.0
libtpu: 0.0.40
codegen_flags: <defaults>
</compile_context>

<pallas_src>
import functools

import jax
import jax.numpy as jnp
from jax.experimental import pallas as pl
from jax.experimental.pallas import tpu as pltpu

LN_EPS = 1e-5          # torch.nn.LayerNorm default
_LANE = 128
_ROW_ALIGN = 32        # covers f32 (8-row) and bf16 (16-row) sublane tiling


def _round_up(n, m):
    return ((n + m - 1) // m) * m


def _vmem_limit_bytes():
    """75% of physical per-core VMEM, conservative 64 MiB (v7x) fallback."""
    cap = None
    try:
        cap = getattr(pltpu.get_tpu_info(), "vmem_capacity_bytes", None)
    except Exception:
        cap = None
    if not cap:
        cap = 64 * 1024 * 1024
    return int(min(cap * 3 // 4, 100 * 1024 * 1024))


_VMEM_LIMIT = _vmem_limit_bytes()


def mlp_kernel(x_ref, w1_ref, b1_ref, g_ref, be_ref, w2_ref, b2_ref, o_ref):
    # One batch tile of rows, full feature width; f32 accumulation + f32
    # elementwise math. If x arrives as bf16 (caller stored it that way in
    # HBM), only this single cheap cast happens on-chip.
    x = x_ref[...].astype(jnp.float32)

    # Linear 1
    h = jnp.dot(x, w1_ref[...], preferred_element_type=jnp.float32)
    h = h + b1_ref[...]                                      # (TB, H) + (1, H)

    # Tanh (f32, EUP)
    h = jnp.tanh(h)

    # LayerNorm over the hidden dim, elementwise affine, biased variance.
    mean = jnp.mean(h, axis=-1, keepdims=True)
    centered = h - mean
    var = jnp.mean(centered * centered, axis=-1, keepdims=True)
    h = centered * jax.lax.rsqrt(var + LN_EPS)
    h = h * g_ref[...] + be_ref[...]

    # Dropout: eval-mode forward == identity (matches module.eval()).
    # TODO(synk): training-mode dropout (pltpu.prng_seed / prng_random_bits) not implemented.

    # Linear 2
    out = jnp.dot(h, w2_ref[...], preferred_element_type=jnp.float32)
    out = out + b2_ref[...]                                   # (TB, D_out)

    # TODO(synk): output stays (tb, 8) -> masked lane stores; the lane-dense
    # repack ((tb,8)->(tb/16,128)) / 4-rows-per-vreg input packing from the
    # review is not implemented (Mosaic minor-dim reshape support is fragile).
    o_ref[...] = out.astype(o_ref.dtype)


def _batch_tile(B, D_in, H, D_out, itemsize, block_rows):
    # VMEM cost per batch row (128-lane padded): double-buffered x/out tiles
    # plus a generous budget for the f32 intermediates (h, mean, centered, ...).
    io_row = 2 * (_round_up(D_in, _LANE) + _round_up(D_out, _LANE)) * itemsize
    tmp_row = 8 * _round_up(H, _LANE) * 4
    budget = _VMEM_LIMIT - (2 << 20)          # weights + compiler-scratch margin
    tb_vmem = max(_ROW_ALIGN,
                  (budget // (io_row + tmp_row)) // _ROW_ALIGN * _ROW_ALIGN)

    tb = min(block_rows, tb_vmem)
    if B >= 2048:
        # Keep >= 2 balanced grid steps so v7x's two TensorCores both work.
        tb = min(tb, _round_up(pl.cdiv(B, 2), _ROW_ALIGN))
    tb = _round_up(max(tb, _ROW_ALIGN), _ROW_ALIGN)
    if tb >= B:
        tb = B   # single full-extent block: always legal, no padding anywhere
    return tb


@functools.partial(jax.jit, static_argnames=("block_rows",))
def mlp_forward(x, w1, b1, gamma, beta, w2, b2, *, block_rows=8192):
    B, D_in = x.shape
    H = w1.shape[1]
    D_out = w2.shape[1]

    tb = _batch_tile(B, D_in, H, D_out, jnp.dtype(x.dtype).itemsize, block_rows)
    grid = (pl.cdiv(B, tb),)   # partial edge block handled by Pallas masking

    out = pl.pallas_call(
        mlp_kernel,
        out_shape=jax.ShapeDtypeStruct((B, D_out), x.dtype),
        grid_spec=pltpu.PrefetchScalarGridSpec(
            num_scalar_prefetch=0,
            grid=grid,
            in_specs=[
                pl.BlockSpec((tb, D_in), lambda i: (i, 0)),   # x (batch-tiled)
                pl.BlockSpec((D_in, H), lambda i: (0, 0)),    # w1 (resident)
                pl.BlockSpec((1, H), lambda i: (0, 0)),       # b1
                pl.BlockSpec((1, H), lambda i: (0, 0)),       # gamma
                pl.BlockSpec((1, H), lambda i: (0, 0)),       # beta
                pl.BlockSpec((H, D_out), lambda i: (0, 0)),   # w2
                pl.BlockSpec((1, D_out), lambda i: (0, 0)),   # b2
            ],
            out_specs=pl.BlockSpec((tb, D_out), lambda i: (i, 0)),
        ),
        compiler_params=pltpu.CompilerParams(
            dimension_semantics=("parallel",),
            vmem_limit_bytes=_VMEM_LIMIT,
        ),
    )(x, w1, b1, gamma, beta, w2, b2)
    return out


def mlp_reference(x, w1, b1, gamma, beta, w2, b2):
    h = x.astype(jnp.float32) @ w1 + b1
    h = jnp.tanh(h)
    mean = jnp.mean(h, axis=-1, keepdims=True)
    var = jnp.mean((h - mean) ** 2, axis=-1, keepdims=True)
    h = (h - mean) * jax.lax.rsqrt(var + LN_EPS) * gamma + beta
    return h @ w2 + b2


if __name__ == "__main__":
    # Module config: MLP(input_dim=16, hidden_dim=32, output_dim=8,
    #                    dropout=0.1, single_span=False)
    # single_span=False doubles input_dim -> effective input_dim = 32.
    input_dim, hidden_dim, output_dim = 32, 32, 8

    key = jax.random.PRNGKey(0)
    k_x, k_w1, k_b1, k_w2, k_b2, k_x2, k_x3 = jax.random.split(key, 7)

    # Deterministic parameter init (uniform, torch.nn.Linear-style bounds).
    lim1 = 1.0 / jnp.sqrt(input_dim)
    lim2 = 1.0 / jnp.sqrt(hidden_dim)
    w1 = jax.random.uniform(k_w1, (input_dim, hidden_dim), jnp.float32, -lim1, lim1)
    b1 = jax.random.uniform(k_b1, (1, hidden_dim), jnp.float32, -lim1, lim1)
    w2 = jax.random.uniform(k_w2, (hidden_dim, output_dim), jnp.float32, -lim2, lim2)
    b2 = jax.random.uniform(k_b2, (1, output_dim), jnp.float32, -lim2, lim2)
    gamma = jnp.ones((1, hidden_dim), jnp.float32)   # LayerNorm weight
    beta = jnp.zeros((1, hidden_dim), jnp.float32)   # LayerNorm bias

    # Case 1: small batch -> single full block, no padding anywhere.
    x = jax.random.normal(k_x, (8, input_dim), jnp.float32)
    out = jax.block_until_ready(mlp_forward(x, w1, b1, gamma, beta, w2, b2))
    ref = mlp_reference(x, w1, b1, gamma, beta, w2, b2)
    assert out.shape == (8, output_dim)
    assert jnp.allclose(out, ref, atol=3e-5, rtol=3e-5)

    # Case 2: batch not a multiple of 8 -> full-extent block, still no pad copy.
    x2 = jax.random.normal(k_x2, (13, input_dim), jnp.float32)
    out2 = jax.block_until_ready(mlp_forward(x2, w1, b1, gamma, beta, w2, b2))
    ref2 = mlp_reference(x2, w1, b1, gamma, beta, w2, b2)
    assert out2.shape == (13, output_dim)
    assert jnp.allclose(out2, ref2, atol=3e-5, rtol=3e-5)

    # Case 3: larger batch -> >= 2 grid steps (v7x megacore path) plus a
    # masked partial edge block (4100 rows, tile = 2080).
    x3 = jax.random.normal(k_x3, (4100, input_dim), jnp.float32)
    out3 = jax.block_until_ready(mlp_forward(x3, w1, b1, gamma, beta, w2, b2))
    ref3 = mlp_reference(x3, w1, b1, gamma, beta, w2, b2)
    assert out3.shape == (4100, output_dim)
    assert jnp.allclose(out3, ref3, atol=3e-5, rtol=3e-5)

    # Case 4: caller already stores x as bf16 in HBM (halves dominant HBM read);
    # in-kernel math still f32, looser tolerance for the bf16 output cast.
    xb = x3.astype(jnp.bfloat16)
    out4 = jax.block_until_ready(mlp_forward(xb, w1, b1, gamma, beta, w2, b2))
    ref4 = mlp_reference(xb.astype(jnp.float32), w1, b1, gamma, beta, w2, b2)
    assert out4.shape == (4100, output_dim)
    assert jnp.allclose(out4.astype(jnp.float32), ref4, atol=2e-2, rtol=2e-2)

    print("KERNEL_OK")
</pallas_src>

<mosaic_0001>
module attributes {stable_mosaic.version = 11 : i64} {
  func.func @mlp_kernel(%arg0: i32, %arg1: memref<8x32xf32, #tpu.memory_space<vmem>>, %arg2: memref<32x32xf32, #tpu.memory_space<vmem>>, %arg3: memref<1x32xf32, #tpu.memory_space<vmem>>, %arg4: memref<1x32xf32, #tpu.memory_space<vmem>>, %arg5: memref<1x32xf32, #tpu.memory_space<vmem>>, %arg6: memref<32x8xf32, #tpu.memory_space<vmem>>, %arg7: memref<1x8xf32, #tpu.memory_space<vmem>>, %arg8: memref<8x8xf32, #tpu.memory_space<vmem>>) attributes {dimension_semantics = [#tpu.dimension_semantics<parallel>], iteration_bounds = array<i64: 1>, scalar_prefetch = 0 : i64, scratch_operands = 0 : i64, tpu.core_type = #tpu.core_type<tc>, window_params = [{transform_indices = @transform_0, window_bounds = array<i64: 8, 32>}, {pipeline_mode = #tpu.pipeline_mode<synchronous>, transform_indices = @transform_1, window_bounds = array<i64: 32, 32>}, {pipeline_mode = #tpu.pipeline_mode<synchronous>, transform_indices = @transform_2, window_bounds = array<i64: 1, 32>}, {pipeline_mode = #tpu.pipeline_mode<synchronous>, transform_indices = @transform_3, window_bounds = array<i64: 1, 32>}, {pipeline_mode = #tpu.pipeline_mode<synchronous>, transform_indices = @transform_4, window_bounds = array<i64: 1, 32>}, {pipeline_mode = #tpu.pipeline_mode<synchronous>, transform_indices = @transform_5, window_bounds = array<i64: 32, 8>}, {pipeline_mode = #tpu.pipeline_mode<synchronous>, transform_indices = @transform_6, window_bounds = array<i64: 1, 8>}, {transform_indices = @transform_7, window_bounds = array<i64: 8, 8>}]} {
    %c0 = arith.constant 0 : index
    %c0_0 = arith.constant 0 : index
    %0 = vector.load %arg1[%c0, %c0_0] : memref<8x32xf32, #tpu.memory_space<vmem>>, vector<8x32xf32>
    %c0_1 = arith.constant 0 : index
    %c0_2 = arith.constant 0 : index
    %1 = vector.load %arg2[%c0_1, %c0_2] : memref<32x32xf32, #tpu.memory_space<vmem>>, vector<32x32xf32>
    %cst = arith.constant dense<0.000000e+00> : vector<8x32xf32>
    %2 = tpu.matmul %0, %1, %cst {dimension_numbers = #tpu.dot_dimension_numbers<[1], [0], [0], [1], [0, 0, 1, 1], [], []>} : vector<8x32xf32>, vector<32x32xf32>, vector<8x32xf32> -> vector<8x32xf32>
    %c0_3 = arith.constant 0 : index
    %c0_4 = arith.constant 0 : index
    %3 = vector.load %arg3[%c0_3, %c0_4] : memref<1x32xf32, #tpu.memory_space<vmem>>, vector<1x32xf32>
    %4 = vector.broadcast %3 : vector<1x32xf32> to vector<8x32xf32>
    %5 = arith.addf %2, %4 : vector<8x32xf32>
    %6 = math.tanh %5 : vector<8x32xf32>
    %cst_5 = arith.constant dense<0.000000e+00> : vector<8xf32>
    %7 = vector.multi_reduction <add>, %6, %cst_5 [1] : vector<8x32xf32> to vector<8xf32>
    %8 = vector.shape_cast %7 : vector<8xf32> to vector<8x1xf32>
    %cst_6 = arith.constant 3.200000e+01 : f32
    %9 = vector.broadcast %cst_6 : f32 to vector<8x1xf32>
    %10 = arith.divf %8, %9 : vector<8x1xf32>
    %11 = vector.broadcast %10 : vector<8x1xf32> to vector<8x32xf32>
    %12 = arith.subf %6, %11 : vector<8x32xf32>
    %13 = arith.mulf %12, %12 : vector<8x32xf32>
    %cst_7 = arith.constant dense<0.000000e+00> : vector<8xf32>
    %14 = vector.multi_reduction <add>, %13, %cst_7 [1] : vector<8x32xf32> to vector<8xf32>
    %15 = vector.shape_cast %14 : vector<8xf32> to vector<8x1xf32>
    %cst_8 = arith.constant 3.200000e+01 : f32
    %16 = vector.broadcast %cst_8 : f32 to vector<8x1xf32>
    %17 = arith.divf %15, %16 : vector<8x1xf32>
    %cst_9 = arith.constant 9.99999974E-6 : f32
    %18 = vector.broadcast %cst_9 : f32 to vector<8x1xf32>
    %19 = arith.addf %17, %18 : vector<8x1xf32>
    %20 = math.rsqrt %19 : vector<8x1xf32>
    %21 = vector.broadcast %20 : vector<8x1xf32> to vector<8x32xf32>
    %22 = arith.mulf %12, %21 : vector<8x32xf32>
    %c0_10 = arith.constant 0 : index
    %c0_11 = arith.constant 0 : index
    %23 = vector.load %arg4[%c0_10, %c0_11] : memref<1x32xf32, #tpu.memory_space<vmem>>, vector<1x32xf32>
    %24 = vector.broadcast %23 : vector<1x32xf32> to vector<8x32xf32>
    %25 = arith.mulf %22, %24 : vector<8x32xf32>
    %c0_12 = arith.constant 0 : index
    %c0_13 = arith.constant 0 : index
    %26 = vector.load %arg5[%c0_12, %c0_13] : memref<1x32xf32, #tpu.memory_space<vmem>>, vector<1x32xf32>
    %27 = vector.broadcast %26 : vector<1x32xf32> to vector<8x32xf32>
    %28 = arith.addf %25, %27 : vector<8x32xf32>
    %c0_14 = arith.constant 0 : index
    %c0_15 = arith.constant 0 : index
    %29 = vector.load %arg6[%c0_14, %c0_15] : memref<32x8xf32, #tpu.memory_space<vmem>>, vector<32x8xf32>
    %cst_16 = arith.constant dense<0.000000e+00> : vector<8x8xf32>
    %30 = tpu.matmul %28, %29, %cst_16 {dimension_numbers = #tpu.dot_dimension_numbers<[1], [0], [0], [1], [0, 0, 1, 1], [], []>} : vector<8x32xf32>, vector<32x8xf32>, vector<8x8xf32> -> vector<8x8xf32>
    %c0_17 = arith.constant 0 : index
    %c0_18 = arith.constant 0 : index
    %31 = vector.load %arg7[%c0_17, %c0_18] : memref<1x8xf32, #tpu.memory_space<vmem>>, vector<1x8xf32>
    %32 = vector.broadcast %31 : vector<1x8xf32> to vector<8x8xf32>
    %33 = arith.addf %30, %32 : vector<8x8xf32>
    %c0_19 = arith.constant 0 : index
    %c0_20 = arith.constant 0 : index
    %34 = vector.load %arg8[%c0_19, %c0_20] : memref<8x8xf32, #tpu.memory_space<vmem>>, vector<8x8xf32>
    tpu.vector_store %arg8[%c0_19, %c0_20], %33 {strides = array<i32>} : memref<8x8xf32, #tpu.memory_space<vmem>>, vector<8x8xf32>,
    return
  }
  func.func @transform_0(%arg0: i32) -> (i32, i32) {
    %c0_i32 = arith.constant 0 : i32
    %c0_i32_0 = arith.constant 0 : i32
    return %arg0, %c0_i32 : i32, i32
  }
  func.func @transform_1(%arg0: i32) -> (i32, i32) {
    %c0_i32 = arith.constant 0 : i32
    %c0_i32_0 = arith.constant 0 : i32
    %c0_i32_1 = arith.constant 0 : i32
    return %c0_i32, %c0_i32_0 : i32, i32
  }
  func.func @transform_2(%arg0: i32) -> (i32, i32) {
    %c0_i32 = arith.constant 0 : i32
    %c0_i32_0 = arith.constant 0 : i32
    %c0_i32_1 = arith.constant 0 : i32
    return %c0_i32, %c0_i32_0 : i32, i32
  }
  func.func @transform_3(%arg0: i32) -> (i32, i32) {
    %c0_i32 = arith.constant 0 : i32
    %c0_i32_0 = arith.constant 0 : i32
    %c0_i32_1 = arith.constant 0 : i32
    return %c0_i32, %c0_i32_0 : i32, i32
  }
  func.func @transform_4(%arg0: i32) -> (i32, i32) {
    %c0_i32 = arith.constant 0 : i32
    %c0_i32_0 = arith.constant 0 : i32
    %c0_i32_1 = arith.constant 0 : i32
    return %c0_i32, %c0_i32_0 : i32, i32
  }
  func.func @transform_5(%arg0: i32) -> (i32, i32) {
    %c0_i32 = arith.constant 0 : i32
    %c0_i32_0 = arith.constant 0 : i32
    %c0_i32_1 = arith.constant 0 : i32
    return %c0_i32, %c0_i32_0 : i32, i32
  }
  func.func @transform_6(%arg0: i32) -> (i32, i32) {
    %c0_i32 = arith.constant 0 : i32
    %c0_i32_0 = arith.constant 0 : i32
    %c0_i32_1 = arith.constant 0 : i32
    return %c0_i32, %c0_i32_0 : i32, i32
  }
  func.func @transform_7(%arg0: i32) -> (i32, i32) {
    %c0_i32 = arith.constant 0 : i32
    %c0_i32_0 = arith.constant 0 : i32
    return %arg0, %c0_i32 : i32, i32
  }
}

</mosaic_0001>

<llo_original>
// kernel: mlp_forward.1
$region0: #{mlp_forward.1}
  #allocation0 [shape = 'u32[]', space=smem, size = 0x4, offset = 0x4, fixed_abs, tag = 'smem constant byte address 0x4 - core index']
  #allocation1 [shape = 'u32[144,128]{1,0:T(1,128)}', space=vmem, size = 0x12000, scoped, tag = 'internal scratch']
  %s0 = inlined_call_operand.vmem [shape: f32[8,32], index: 0, kind: input, shape index: {}]
  %s1 = inlined_call_operand.vmem [shape: f32[32,32], index: 1, kind: input, shape index: {}]
  %s2 = inlined_call_operand.vmem [shape: f32[1,32], index: 2, kind: input, shape index: {}]
  %s3 = inlined_call_operand.hbm [shape: f32[1,32], index: 3, kind: input, shape index: {}]
  %s4 = inlined_call_operand.hbm [shape: f32[1,32], index: 4, kind: input, shape index: {}]
  %s5 = inlined_call_operand.vmem [shape: f32[32,8], index: 5, kind: input, shape index: {}]
  %s6 = inlined_call_operand.vmem [shape: f32[1,8], index: 6, kind: input, shape index: {}]
  %s7 = inlined_call_operand.hbm [shape: f32[8,8], index: 7, kind: output, shape index: {}]
  %s8 = sld [smem:[#allocation0]]
  $region46: #{mlp_forward.1} parent=0
    _
  %s10 = ssub.s32 1, %s8
  %s11 = scalar_select 0, %s10, %s8
  $region1: #{mlp_forward.1} parent=0
    #allocation2 [shape = 'u8[512]{0}', space=vmem, size = 0x400, scoped, tag = 'input window, operand 3, single buffered']
    #allocation3 [shape = 's32[1]{0}', space=sflag, size = 0x4, scoped, tag = 'scoped memory for mlp_forward.1']
    #allocation4 [shape = 's32[1]{0}', space=sflag, size = 0x4, scoped, tag = 'scoped memory for mlp_forward.1']
    #allocation5 [shape = 'u8[512]{0}', space=vmem, size = 0x400, scoped, tag = 'input window, operand 4, single buffered']
    #allocation6 [shape = 's32[1]{0}', space=sflag, size = 0x4, scoped, tag = 'scoped memory for mlp_forward.1']
    #allocation7 [shape = 'u8[4096]{0}', space=vmem, size = 0x1000, scoped, tag = 'output window, operand 0, single buffered']
    %12 = vsyncpa [#allocation3], 0
    %13 = vsyncpa [#allocation6], 0
    %14 = vsyncpa [#allocation4], 0
    // Predicated region
    $region2: #{mlp_forward.1} parent=1 // pred_check
      _
    $region3: #{mlp_forward.1} parent=1 // pred_check_branch
      %16 = sbr.rel (0) target = $region5
    $region4: #{mlp_forward.1} parent=1 // pred_region
      _
    $region5: #{mlp_forward.1} parent=1 // pred_fallthru
      _
    // Predicated region
    $region6: #{mlp_forward.1} parent=1 // pred_check
      _
    $region7: #{mlp_forward.1} parent=1 // pred_check_branch
      %18 = sbr.rel (0) target = $region9
    $region8: #{mlp_forward.1} parent=1 // pred_region
      _
    $region9: #{mlp_forward.1} parent=1 // pred_fallthru
      _
    // Predicated region
    $region10: #{mlp_forward.1} parent=1 // pred_check
      _
    $region11: #{mlp_forward.1} parent=1 // pred_check_branch
      %20 = sbr.rel (0) target = $region13
    $region12: #{mlp_forward.1} parent=1 // pred_region
      _
    $region13: #{mlp_forward.1} parent=1 // pred_fallthru
      _
    // Predicated region
    $region14: #{mlp_forward.1} parent=1 // pred_check
      _
    $region15: #{mlp_forward.1} parent=1 // pred_check_branch
      %22 = sbr.rel (0) target = $region17
    $region16: #{mlp_forward.1} parent=1 // pred_region
      %s24 = ssub.s32 16, 16
      %25 = vsyncadd [#allocation3], %s24
      %s27 = sshll.u32 [#allocation2], 4
      %s28 = int_to_ptr.vmem [resolvable:$true] %s27
      %30 = dma.hbm_to_vmem [thread:$0]  %s3, 16, %s28, [#allocation3]
    $region17: #{mlp_forward.1} parent=1 // pred_fallthru
      _
    // Predicated region
    $region18: #{mlp_forward.1} parent=1 // pred_check
      _
    $region19: #{mlp_forward.1} parent=1 // pred_check_branch
      %32 = sbr.rel (0) target = $region21
    $region20: #{mlp_forward.1} parent=1 // pred_region
      %s34 = ssub.s32 16, 16
      %35 = vsyncadd [#allocation6], %s34
      %s37 = sshll.u32 [#allocation5], 4
      %s38 = int_to_ptr.vmem [resolvable:$true] %s37
      %40 = dma.hbm_to_vmem [thread:$0]  %s4, 16, %s38, [#allocation6]
    $region21: #{mlp_forward.1} parent=1 // pred_fallthru
      _
    // Predicated region
    $region22: #{mlp_forward.1} parent=1 // pred_check
      _
    $region23: #{mlp_forward.1} parent=1 // pred_check_branch
      %42 = sbr.rel (0) target = $region25
    $region24: #{mlp_forward.1} parent=1 // pred_region
      _
    $region25: #{mlp_forward.1} parent=1 // pred_fallthru
      _
    // Predicated region
    $region26: #{mlp_forward.1} parent=1 // pred_check
      _
    $region27: #{mlp_forward.1} parent=1 // pred_check_branch
      %44 = sbr.rel (0) target = $region29
    $region28: #{mlp_forward.1} parent=1 // pred_region
      _
    $region29: #{mlp_forward.1} parent=1 // pred_fallthru
      _
    // Predicated region
    $region30: #{mlp_forward.1} parent=1 // pred_check
      _
    $region31: #{mlp_forward.1} parent=1 // pred_check_branch
      %46 = sbr.rel (0) target = $region33
    $region32: #{mlp_forward.1} parent=1 // pred_region
      %47 = dma.done [#allocation3], 16
    $region33: #{mlp_forward.1} parent=1 // pred_fallthru
      _
    // Predicated region
    $region34: #{mlp_forward.1} parent=1 // pred_check
      _
    $region35: #{mlp_forward.1} parent=1 // pred_check_branch
      %49 = sbr.rel (0) target = $region37
    $region36: #{mlp_forward.1} parent=1 // pred_region
      %50 = dma.done [#allocation6], 16
    $region37: #{mlp_forward.1} parent=1 // pred_fallthru
      _
    %v51 = vld [vmem:[%s0] sm:$0xff]
    %v52 = vld [vmem:[%s1] sm:$0xff]
    %v53 = vld [vmem:[%s1 + $0x8] sm:$0xff]
    %v54 = vld [vmem:[%s1 + $0x10] sm:$0xff]
    %v55 = vld [vmem:[%s1 + $0x18] sm:$0xff]
    %v56 = vld [vmem:[%s2] sm:$0x1]
    %v58 = vlaneseq
    %v59 = vshrl.u32 %v58, 7
    %v60 = vsub.s32 0, %v59
    %v61 = vrot.slane %v56, %v60
    %vm63 = vcmask 261120
    %v65 = vsel %vm63, %v51, 0
    %67 = vmatprep.subr.mxu0 0.0
    %68 = vmatpush1.msra.mxu0 0.0
    %69 = vmatprep.subr.mxu0 0.0
    %70 = vmatpush1.msra.mxu0 0.0
    %71 = vmatprep.subr.mxu0 0.0
    %72 = vmatpush1.msra.mxu0 0.0
    %73 = vmatprep.subr.mxu0 0.0
    %74 = vmatpush1.msra.mxu0 0.0
    %75 = vmatprep.subr.mxu0 0.0
    %76 = vmatpush1.msra.mxu0 0.0
    %77 = vmatprep.subr.mxu0 0.0
    %78 = vmatpush1.msra.mxu0 0.0
    %79 = vmatprep.subr.mxu0 0.0
    %80 = vmatpush1.msra.mxu0 0.0
    %81 = vmatprep.subr.mxu0 0.0
    %82 = vmatpush1.msra.mxu0 0.0
    %83 = vmatprep.subr.mxu0 0.0
    %84 = vmatpush1.msra.mxu0 0.0
    %85 = vmatprep.subr.mxu0 0.0
    %86 = vmatpush1.msra.mxu0 0.0
    %87 = vmatprep.subr.mxu0 0.0
    %88 = vmatpush1.msra.mxu0 0.0
    %89 = vmatprep.subr.mxu0 0.0
    %90 = vmatpush1.msra.mxu0 0.0
    %91 = vmatprep.subr.mxu0 0.0
    %92 = vmatpush1.msra.mxu0 %v55
    %93 = vmatprep.subr.mxu0 0.0
    %94 = vmatpush1.msra.mxu0 %v54
    %95 = vmatprep.subr.mxu0 0.0
    %96 = vmatpush1.msra.mxu0 %v53
    %97 = vmatprep.subr.mxu0 0.0
    %98 = vmatpush1.msra.mxu0 %v52
    %99 = vmatprep.subr.mxu0 0.0
    %100 = vmatpush2.msra.mxu0 0.0
    %101 = vmatprep.subr.mxu0 0.0
    %102 = vmatpush2.msra.mxu0 0.0
    %103 = vmatprep.subr.mxu0 0.0
    %104 = vmatpush2.msra.mxu0 0.0
    %105 = vmatprep.subr.mxu0 0.0
    %106 = vmatpush2.msra.mxu0 0.0
    %107 = vmatprep.subr.mxu0 0.0
    %108 = vmatpush2.msra.mxu0 0.0
    %109 = vmatprep.subr.mxu0 0.0
    %110 = vmatpush2.msra.mxu0 0.0
    %111 = vmatprep.subr.mxu0 0.0
    %112 = vmatpush2.msra.mxu0 0.0
    %113 = vmatprep.subr.mxu0 0.0
    %114 = vmatpush2.msra.mxu0 0.0
    %115 = vmatprep.subr.mxu0 0.0
    %116 = vmatpush2.msra.mxu0 0.0
    %117 = vmatprep.subr.mxu0 0.0
    %118 = vmatpush2.msra.mxu0 0.0
    %119 = vmatprep.subr.mxu0 0.0
    %120 = vmatpush2.msra.mxu0 0.0
    %121 = vmatprep.subr.mxu0 0.0
    %122 = vmatpush2.msra.mxu0 0.0
    %123 = vmatprep.subr.mxu0 0.0
    %124 = vmatpush2.msra.mxu0 0.0
    %125 = vmatprep.subr.mxu0 0.0
    %126 = vmatpush2.msra.mxu0 0.0
    %127 = vmatprep.subr.mxu0 0.0
    %128 = vmatpush2.msra.mxu0 0.0
    %129 = vmatprep.subr.mxu0 0.0
    %130 = vmatpush2.msra.mxu0 0.0
    %131 = vmatprep.mubr.f32.mxu0 0.0
    %132 = vmatmul.mubr.f32.gmra.mxu0 %v65
    %v133 = vpop.f32.mrf.mxu0
    %v134 = vadd.f32 %v61, %v133
    %v135 = vpop.f32.mrf.mxu0
    %136 = vdwg.mxu0
    %v137 = vtanh.pop %v134
    %v138 = vsel %vm63, %v137, 0.0
    %139 = vadd.xlane.f32.xlu0 %v138
    %v140 = vpop.xlane.xlu0 %139
    %v141 = vrcp.pop 32.0
    %v142 = vmul.f32 %v140, %v141
    %v143 = vsub.f32 %v137, %v142
    %v144 = vmul.f32 %v143, %v143
    %v145 = vsel %vm63, %v144, 0.0
    %146 = vadd.xlane.f32.xlu0 %v145
    %v147 = vpop.xlane.xlu0 %146
    %v148 = vmul.f32 %v147, %v141
    %v149 = vadd.f32 %v148, 1e-05
    %v150 = vrsqrt.pop %v149
    %v151 = vmul.f32 %v143, %v150
    %v152 = vld [vmem:[#allocation2] sm:$0x1]
    %v154 = vlaneseq
    %v155 = vshrl.u32 %v154, 7
    %v156 = vsub.s32 0, %v155
    %v157 = vrot.slane %v152, %v156
    %v159 = vmul.f32 %v151, %v157
    %v160 = vld [vmem:[#allocation5] sm:$0x1]
    %v162 = vlaneseq
    %v163 = vshrl.u32 %v162, 7
    %v164 = vsub.s32 0, %v163
    %v165 = vrot.slane %v160, %v164
    %v167 = vadd.f32 %v159, %v165
    %v168 = vld [vmem:[%s5] sm:$0xff]
    %v169 = vld [vmem:[%s5 + $0x8] sm:$0xff]
    %v170 = vld [vmem:[%s5 + $0x10] sm:$0xff]
    %v171 = vld [vmem:[%s5 + $0x18] sm:$0xff]
    %v172 = vld [vmem:[%s6] sm:$0x1]
    %v174 = vlaneseq
    %v175 = vshrl.u32 %v174, 7
    %v176 = vsub.s32 0, %v175
    %v177 = vrot.slane %v172, %v176
    %v180 = vsel %vm63, %v167, 0
    %182 = vmatprep.subr.mxu0 0.0
    %183 = vmatpush1.msra.mxu0 0.0
    %184 = vmatprep.subr.mxu0 0.0
    %185 = vmatpush1.msra.mxu0 0.0
    %186 = vmatprep.subr.mxu0 0.0
    %187 = vmatpush1.msra.mxu0 0.0
    %188 = vmatprep.subr.mxu0 0.0
    %189 = vmatpush1.msra.mxu0 0.0
    %190 = vmatprep.subr.mxu0 0.0
    %191 = vmatpush1.msra.mxu0 0.0
    %192 = vmatprep.subr.mxu0 0.0
    %193 = vmatpush1.msra.mxu0 0.0
    %194 = vmatprep.subr.mxu0 0.0
    %195 = vmatpush1.msra.mxu0 0.0
    %196 = vmatprep.subr.mxu0 0.0
    %197 = vmatpush1.msra.mxu0 0.0
    %198 = vmatprep.subr.mxu0 0.0
    %199 = vmatpush1.msra.mxu0 0.0
    %200 = vmatprep.subr.mxu0 0.0
    %201 = vmatpush1.msra.mxu0 0.0
    %202 = vmatprep.subr.mxu0 0.0
    %203 = vmatpush1.msra.mxu0 0.0
    %204 = vmatprep.subr.mxu0 0.0
    %205 = vmatpush1.msra.mxu0 0.0
    %206 = vmatprep.subr.mxu0 0.0
    %207 = vmatpush1.msra.mxu0 %v171
    %208 = vmatprep.subr.mxu0 0.0
    %209 = vmatpush1.msra.mxu0 %v170
    %210 = vmatprep.subr.mxu0 0.0
    %211 = vmatpush1.msra.mxu0 %v169
    %212 = vmatprep.subr.mxu0 0.0
    %213 = vmatpush1.msra.mxu0 %v168
    %214 = vmatprep.subr.mxu0 0.0
    %215 = vmatpush2.msra.mxu0 0.0
    %216 = vmatprep.subr.mxu0 0.0
    %217 = vmatpush2.msra.mxu0 0.0
    %218 = vmatprep.subr.mxu0 0.0
    %219 = vmatpush2.msra.mxu0 0.0
    %220 = vmatprep.subr.mxu0 0.0
    %221 = vmatpush2.msra.mxu0 0.0
    %222 = vmatprep.subr.mxu0 0.0
    %223 = vmatpush2.msra.mxu0 0.0
    %224 = vmatprep.subr.mxu0 0.0
    %225 = vmatpush2.msra.mxu0 0.0
    %226 = vmatprep.subr.mxu0 0.0
    %227 = vmatpush2.msra.mxu0 0.0
    %228 = vmatprep.subr.mxu0 0.0
    %229 = vmatpush2.msra.mxu0 0.0
    %230 = vmatprep.subr.mxu0 0.0
    %231 = vmatpush2.msra.mxu0 0.0
    %232 = vmatprep.subr.mxu0 0.0
    %233 = vmatpush2.msra.mxu0 0.0
    %234 = vmatprep.subr.mxu0 0.0
    %235 = vmatpush2.msra.mxu0 0.0
    %236 = vmatprep.subr.mxu0 0.0
    %237 = vmatpush2.msra.mxu0 0.0
    %238 = vmatprep.subr.mxu0 0.0
    %239 = vmatpush2.msra.mxu0 0.0
    %240 = vmatprep.subr.mxu0 0.0
    %241 = vmatpush2.msra.mxu0 0.0
    %242 = vmatprep.subr.mxu0 0.0
    %243 = vmatpush2.msra.mxu0 0.0
    %244 = vmatprep.subr.mxu0 0.0
    %245 = vmatpush2.msra.mxu0 0.0
    %246 = vmatprep.mubr.f32.mxu0 0.0
    %247 = vmatmul.mubr.f32.gmra.mxu0 %v180
    %v248 = vpop.f32.mrf.mxu0
    %v249 = vadd.f32 %v177, %v248
    %v250 = vpop.f32.mrf.mxu0
    %251 = vdwg.mxu0
    %vm252 = vcmask 64512
    %253 = vst.msk [vmem:[#allocation7] sm:$0xff] %vm252, %v249
    // Predicated region
    $region38: #{mlp_forward.1} parent=1 // pred_check
      _
    $region39: #{mlp_forward.1} parent=1 // pred_check_branch
      %255 = sbr.rel (0) target = $region41
    $region40: #{mlp_forward.1} parent=1 // pred_region
      %s257 = ssub.s32 128, 128
      %258 = vsyncadd [#allocation4], %s257
      %s260 = sshll.u32 [#allocation7], 4
      %s261 = int_to_ptr.vmem [resolvable:$true] %s260
      %263 = dma.vmem_to_hbm [thread:$0]  %s261, 128, %s7, [#allocation4]
    $region41: #{mlp_forward.1} parent=1 // pred_fallthru
      _
    // Predicated region
    $region42: #{mlp_forward.1} parent=1 // pred_check
      _
    $region43: #{mlp_forward.1} parent=1 // pred_check_branch
      %265 = sbr.rel (0) target = $region45
    $region44: #{mlp_forward.1} parent=1 // pred_region
      %266 = dma.done [#allocation4], 128
    $region45: #{mlp_forward.1} parent=1 // pred_fallthru
      _
    %267 = vsyncpa [#allocation3], 1
    %268 = vsyncpa [#allocation6], 1
    %269 = vsyncpa [#allocation4], 1

</llo_original>
